<compile_context>
chip_gen: v6e
topology: v6e:2x2x1
jax: 0.10.0
libtpu: 0.0.40
codegen_flags: <defaults>
</compile_context>

<pallas_src>
import numpy as np
import jax
import jax.numpy as jnp
from jax import lax
from jax.experimental import pallas as pl
from jax.experimental.pallas import tpu as pltpu

LANE = 128
SUBLANE = 8
MAX_BLOCK_ROWS = 256        # 256x128 i32/f32 tiles: ~128 KiB per buffer, safe on v5e/v6e/v7x
TRIALS_PER_ITER = 4         # 2 hash draws per iteration, 2 x 16-bit Bernoulli trials per draw


def _hash32(x):
    """lowbias32: bijective avalanche mix on uint32 (stateless counter-mode PRNG)."""
    x = x ^ (x >> 16)
    x = x * jnp.uint32(0x7FEB352D)
    x = x ^ (x >> 15)
    x = x * jnp.uint32(0x846CA68B)
    x = x ^ (x >> 16)
    return x


def _binomial_thinning_kernel(scal_ref, counts_ref, out_ref):
    """out[i] ~ Binomial(counts[i], succ_p), sampled as guarded Bernoulli trials.

    scal_ref   (SMEM, int32[3]) : [seed, thr16 = round(succ_p * 2**16), n_iters]
    counts_ref (VMEM, int32[BR, 128]) : per-entry counts (padding entries are 0)
    out_ref    (VMEM, f32  [BR, 128]) : thinned counts
    """
    seed_u = scal_ref[0].astype(jnp.uint32)
    thr_u = scal_ref[1].astype(jnp.uint32)      # Bernoulli success iff u16 < thr (thr==65536 -> always)
    n_iters = scal_ref[2]                       # ceil(max_count / TRIALS_PER_ITER), dynamic

    br, lane = counts_ref.shape
    n_i = counts_ref[...]                       # (BR, 128) int32 counts

    # Globally-unique per-element counter: independent streams per element, per grid block
    # (and per TensorCore under megacore sharding) regardless of tiling.
    row_ids = lax.broadcasted_iota(jnp.int32, (br, lane), 0)
    col_ids = lax.broadcasted_iota(jnp.int32, (br, lane), 1)
    gidx = (pl.program_id(0) * br + row_ids) * lane + col_ids
    gmix = _hash32(gidx.astype(jnp.uint32) + seed_u * jnp.uint32(0x9E3779B9))

    def body(t, acc):
        # Two counter-mode draws -> four 16-bit uniforms (manually unrolled x4 trials).
        d0 = (jnp.uint32(2) * t.astype(jnp.uint32)) * jnp.uint32(0x85EBCA6B)
        bits0 = _hash32(gmix + d0)
        bits1 = _hash32(gmix + d0 + jnp.uint32(0x85EBCA6B))
        k0 = t * TRIALS_PER_ITER
        b0 = (((bits0 & jnp.uint32(0xFFFF)) < thr_u) & (k0 < n_i)).astype(jnp.int32)
        b1 = (((bits0 >> 16) < thr_u) & ((k0 + 1) < n_i)).astype(jnp.int32)
        b2 = (((bits1 & jnp.uint32(0xFFFF)) < thr_u) & ((k0 + 2) < n_i)).astype(jnp.int32)
        b3 = (((bits1 >> 16) < thr_u) & ((k0 + 3) < n_i)).astype(jnp.int32)
        return acc + b0 + b1 + b2 + b3

    acc = lax.fori_loop(0, n_iters, body, jnp.zeros((br, lane), jnp.int32))
    out_ref[...] = acc.astype(jnp.float32)      # single int->float cast at the store


def _binomial_thinning_call(scalars, counts2d, block_rows):
    rows, lanes = counts2d.shape
    grid = (rows // block_rows,)
    return pl.pallas_call(
        _binomial_thinning_kernel,
        out_shape=jax.ShapeDtypeStruct((rows, lanes), jnp.float32),
        grid_spec=pltpu.PrefetchScalarGridSpec(
            num_scalar_prefetch=1,
            grid=grid,
            in_specs=[pl.BlockSpec((block_rows, lanes), lambda i, s: (i, 0))],
            out_specs=pl.BlockSpec((block_rows, lanes), lambda i, s: (i, 0)),
        ),
        compiler_params=pltpu.CompilerParams(
            dimension_semantics=("parallel",),
            vmem_limit_bytes=32 * 1024 * 1024,
        ),
    )(scalars, counts2d)


def _pad_layout(n_elems):
    """Lane-dense padded layout (rows multiple of the block size) — all static Python ints."""
    rows = max(SUBLANE, -(-n_elems // LANE))
    rows = -(-rows // SUBLANE) * SUBLANE
    block_rows = min(rows, MAX_BLOCK_ROWS)
    rows = -(-rows // block_rows) * block_rows
    return rows, block_rows


def _binomial_dropout_impl(x, key, low, high, p):
    """With prob p: x_new[i] ~ Binomial(round(x[i]), 1 - U(low, high)); else x unchanged."""
    k_active, k_rate, k_seed = jax.random.split(key, 3)
    drop_prob = low + (high - low) * jax.random.uniform(k_rate, (), jnp.float32)
    succ_p = 1.0 - drop_prob
    # 16-bit fixed-point success threshold (1/65536 quantization accepted; succ_p==1.0 exact).
    thr = jnp.clip(jnp.round(succ_p * 65536.0), 0.0, 65536.0).astype(jnp.int32)
    seed = jax.random.randint(k_seed, (), 0, 2**31 - 1, dtype=jnp.int32)

    counts = jnp.round(jnp.maximum(x.astype(jnp.float32), 0.0)).astype(jnp.int32)
    n = counts.size
    rows, block_rows = _pad_layout(n)
    flat = jnp.pad(counts.reshape(-1), (0, rows * LANE - n))
    c2d = flat.reshape(rows, LANE)

    # Trial loop runs only up to the actual max count (no static-cap truncation).
    n_iters = (jnp.max(c2d) + (TRIALS_PER_ITER - 1)) // TRIALS_PER_ITER
    scalars = jnp.stack([seed, thr, n_iters.astype(jnp.int32)])

    out2d = _binomial_thinning_call(scalars, c2d, block_rows)
    thinned = out2d.reshape(-1)[:n].reshape(x.shape).astype(x.dtype)

    active = jax.random.uniform(k_active, (), jnp.float32) < p
    return jnp.where(active, thinned, x)


_binomial_dropout_jit = jax.jit(_binomial_dropout_impl)


class BinomialDropoutPallas:
    """Random transform (x, key) -> x_new: per-value binomial thinning of counts."""

    def __init__(self, p, dropout_rate):
        if isinstance(dropout_rate, float):
            dropout_rate = (dropout_rate, dropout_rate)
        rates = tuple(float(r) for r in dropout_rate)
        self.low, self.high = min(rates), max(rates)
        assert self.high < 1.0
        self.p = float(p)

    def __call__(self, x, key):
        return _binomial_dropout_jit(x, key, self.low, self.high, self.p)


class DropoutSparseTensorPallas:
    """Original DropoutSparseTensor forward on a sparse-COO (indices, values, size) triple."""

    def __init__(self, p, dropout_rate):
        self._dropout = BinomialDropoutPallas(p, dropout_rate)

    def forward(self, indices, values, size, key):
        values_new = self._dropout(values.astype(jnp.float32), key)
        # TODO(synk): dynamic-shape removal of zeroed entries has no fixed-shape Pallas
        # equivalent; done with one host sync here (coalesce() is a no-op for unique indices).
        vals_np = np.asarray(jax.device_get(values_new))
        idx_np = np.asarray(jax.device_get(indices))
        keep = vals_np > 0
        return idx_np[:, keep], vals_np[keep], size


class TransformForListPallas:
    """JAX/Pallas port of tissue_purifier TransformForList.

    transform_before_stack: applied one element at a time (DIFFERENT random transform each).
    transform_after_stack:  applied to the whole stack (SAME random transform for all).
    Transforms are callables (x, key) -> y.
    """

    def __init__(self, transform_before_stack, transform_after_stack):
        self.transform_before_stack = transform_before_stack
        self.transform_after_stack = transform_after_stack

    def forward(self, x, key):
        if not isinstance(x, (list, tuple)):
            x = [x]
        k_before, k_after = jax.random.split(key)
        if self.transform_before_stack is not None:
            y = jnp.stack(
                [self.transform_before_stack(t, jax.random.fold_in(k_before, i))
                 for i, t in enumerate(x)],
                axis=-4)
        else:
            y = jnp.stack(list(x), axis=-4)
        if self.transform_after_stack is not None:
            return self.transform_after_stack(y, k_after)
        return y

    __call__ = forward


if __name__ == "__main__":
    key = jax.random.PRNGKey(0)
    k_data, k_fwd, k_sparse = jax.random.split(key, 3)

    # List of 2 dense count images (C=4, H=16, W=16) with integer counts 0..10.
    imgs = [
        jax.random.randint(jax.random.fold_in(k_data, i), (4, 16, 16), 0, 11).astype(jnp.float32)
        for i in range(2)
    ]

    before = BinomialDropoutPallas(p=1.0, dropout_rate=(0.2, 0.8))   # different per element
    after = BinomialDropoutPallas(p=0.5, dropout_rate=(0.1, 0.3))    # same for whole stack
    module = TransformForListPallas(transform_before_stack=before,
                                    transform_after_stack=after)

    y = module.forward(imgs, k_fwd)
    y = jax.block_until_ready(y)

    x_stack = jnp.stack(imgs, axis=-4)
    assert y.shape == (2, 4, 16, 16)
    assert bool(jnp.all(y >= 0.0))
    assert bool(jnp.all(y <= x_stack))          # binomial thinning never increases counts

    # Also exercise the sparse-COO dropout path (DropoutSparseTensor semantics).
    nnz = 800
    size = (4, 16, 16)
    c = jax.random.randint(jax.random.fold_in(k_sparse, 0), (nnz,), 0, size[0])
    h = jax.random.randint(jax.random.fold_in(k_sparse, 1), (nnz,), 0, size[1])
    w = jax.random.randint(jax.random.fold_in(k_sparse, 2), (nnz,), 0, size[2])
    indices = jnp.stack([c, h, w], axis=0).astype(jnp.int32)
    values = jax.random.randint(jax.random.fold_in(k_sparse, 3), (nnz,), 1, 11).astype(jnp.float32)

    sparse_mod = DropoutSparseTensorPallas(p=1.0, dropout_rate=(0.2, 0.8))
    out_idx, out_vals, out_size = sparse_mod.forward(indices, values, size,
                                                     jax.random.fold_in(k_fwd, 7))
    assert out_idx.shape[0] == 3
    assert out_idx.shape[1] == out_vals.shape[0]
    assert np.all(out_vals > 0)
    assert np.all(out_vals <= float(jnp.max(values)))

    print("KERNEL_OK")
</pallas_src>

<mosaic_0001>
module attributes {stable_mosaic.version = 11 : i64} {
  func.func @_binomial_thinning_kernel(%arg0: i32, %arg1: memref<3xi32, #tpu.memory_space<smem>>, %arg2: memref<8x128xi32, #tpu.memory_space<vmem>>, %arg3: memref<8x128xf32, #tpu.memory_space<vmem>>) attributes {dimension_semantics = [#tpu.dimension_semantics<parallel>], iteration_bounds = array<i64: 1>, scalar_prefetch = 1 : i64, scratch_operands = 0 : i64, tpu.core_type = #tpu.core_type<tc>, window_params = [{transform_indices = @transform_0, window_bounds = array<i64: 8, 128>}, {transform_indices = @transform_1, window_bounds = array<i64: 8, 128>}]} {
    %c0 = arith.constant 0 : index
    %0 = memref.load %arg1[%c0] : memref<3xi32, #tpu.memory_space<smem>>
    %c1 = arith.constant 1 : index
    %1 = memref.load %arg1[%c1] : memref<3xi32, #tpu.memory_space<smem>>
    %c2 = arith.constant 2 : index
    %2 = memref.load %arg1[%c2] : memref<3xi32, #tpu.memory_space<smem>>
    %c0_0 = arith.constant 0 : index
    %c0_1 = arith.constant 0 : index
    %3 = vector.load %arg2[%c0_0, %c0_1] : memref<8x128xi32, #tpu.memory_space<vmem>>, vector<8x128xi32>
    %4 = tpu.iota {dimensions = array<i32: 0>} : vector<8x128xi32>
    %5 = tpu.iota {dimensions = array<i32: 1>} : vector<8x128xi32>
    %c8_i32 = arith.constant 8 : i32
    %6 = arith.muli %arg0, %c8_i32 : i32
    %7 = vector.broadcast %6 : i32 to vector<8x128xi32>
    %8 = arith.addi %7, %4 : vector<8x128xi32>
    %c128_i32 = arith.constant 128 : i32
    %9 = vector.broadcast %c128_i32 : i32 to vector<8x128xi32>
    %10 = arith.muli %8, %9 : vector<8x128xi32>
    %11 = arith.addi %10, %5 : vector<8x128xi32>
    %c-1640531527_i32 = arith.constant -1640531527 : i32
    %12 = arith.muli %0, %c-1640531527_i32 : i32
    %13 = vector.broadcast %12 : i32 to vector<8x128xi32>
    %14 = arith.addi %11, %13 : vector<8x128xi32>
    %c16_i32 = arith.constant 16 : i32
    %15 = vector.broadcast %c16_i32 : i32 to vector<8x128xi32>
    %16 = arith.shrui %14, %15 : vector<8x128xi32>
    %17 = arith.xori %14, %16 : vector<8x128xi32>
    %c2146121005_i32 = arith.constant 2146121005 : i32
    %18 = vector.broadcast %c2146121005_i32 : i32 to vector<8x128xi32>
    %19 = arith.muli %17, %18 : vector<8x128xi32>
    %c15_i32 = arith.constant 15 : i32
    %20 = vector.broadcast %c15_i32 : i32 to vector<8x128xi32>
    %21 = arith.shrui %19, %20 : vector<8x128xi32>
    %22 = arith.xori %19, %21 : vector<8x128xi32>
    %c-2073254261_i32 = arith.constant -2073254261 : i32
    %23 = vector.broadcast %c-2073254261_i32 : i32 to vector<8x128xi32>
    %24 = arith.muli %22, %23 : vector<8x128xi32>
    %c16_i32_2 = arith.constant 16 : i32
    %25 = vector.broadcast %c16_i32_2 : i32 to vector<8x128xi32>
    %26 = arith.shrui %24, %25 : vector<8x128xi32>
    %27 = arith.xori %24, %26 : vector<8x128xi32>
    %c0_i32 = arith.constant 0 : i32
    %28 = vector.broadcast %c0_i32 : i32 to vector<8x128xi32>
    %c0_i32_3 = arith.constant 0 : i32
    %29 = arith.subi %2, %c0_i32_3 : i32
    %30 = arith.addi %c0_i32_3, %29 : i32
    %c1_i32 = arith.constant 1 : i32
    %31 = scf.for %arg4 = %c0_i32_3 to %30 step %c1_i32 iter_args(%arg5 = %28) -> (vector<8x128xi32>)  : i32 {
      %c2_i32 = arith.constant 2 : i32
      %34 = arith.muli %c2_i32, %arg4 : i32
      %c-2048144789_i32 = arith.constant -2048144789 : i32
      %35 = arith.muli %34, %c-2048144789_i32 : i32
      %36 = vector.broadcast %35 : i32 to vector<8x128xi32>
      %37 = arith.addi %27, %36 : vector<8x128xi32>
      %c16_i32_6 = arith.constant 16 : i32
      %38 = vector.broadcast %c16_i32_6 : i32 to vector<8x128xi32>
      %39 = arith.shrui %37, %38 : vector<8x128xi32>
      %40 = arith.xori %37, %39 : vector<8x128xi32>
      %c2146121005_i32_7 = arith.constant 2146121005 : i32
      %41 = vector.broadcast %c2146121005_i32_7 : i32 to vector<8x128xi32>
      %42 = arith.muli %40, %41 : vector<8x128xi32>
      %c15_i32_8 = arith.constant 15 : i32
      %43 = vector.broadcast %c15_i32_8 : i32 to vector<8x128xi32>
      %44 = arith.shrui %42, %43 : vector<8x128xi32>
      %45 = arith.xori %42, %44 : vector<8x128xi32>
      %c-2073254261_i32_9 = arith.constant -2073254261 : i32
      %46 = vector.broadcast %c-2073254261_i32_9 : i32 to vector<8x128xi32>
      %47 = arith.muli %45, %46 : vector<8x128xi32>
      %c16_i32_10 = arith.constant 16 : i32
      %48 = vector.broadcast %c16_i32_10 : i32 to vector<8x128xi32>
      %49 = arith.shrui %47, %48 : vector<8x128xi32>
      %50 = arith.xori %47, %49 : vector<8x128xi32>
      %51 = vector.broadcast %35 : i32 to vector<8x128xi32>
      %52 = arith.addi %27, %51 : vector<8x128xi32>
      %c-2048144789_i32_11 = arith.constant -2048144789 : i32
      %53 = vector.broadcast %c-2048144789_i32_11 : i32 to vector<8x128xi32>
      %54 = arith.addi %52, %53 : vector<8x128xi32>
      %c16_i32_12 = arith.constant 16 : i32
      %55 = vector.broadcast %c16_i32_12 : i32 to vector<8x128xi32>
      %56 = arith.shrui %54, %55 : vector<8x128xi32>
      %57 = arith.xori %54, %56 : vector<8x128xi32>
      %c2146121005_i32_13 = arith.constant 2146121005 : i32
      %58 = vector.broadcast %c2146121005_i32_13 : i32 to vector<8x128xi32>
      %59 = arith.muli %57, %58 : vector<8x128xi32>
      %c15_i32_14 = arith.constant 15 : i32
      %60 = vector.broadcast %c15_i32_14 : i32 to vector<8x128xi32>
      %61 = arith.shrui %59, %60 : vector<8x128xi32>
      %62 = arith.xori %59, %61 : vector<8x128xi32>
      %c-2073254261_i32_15 = arith.constant -2073254261 : i32
      %63 = vector.broadcast %c-2073254261_i32_15 : i32 to vector<8x128xi32>
      %64 = arith.muli %62, %63 : vector<8x128xi32>
      %c16_i32_16 = arith.constant 16 : i32
      %65 = vector.broadcast %c16_i32_16 : i32 to vector<8x128xi32>
      %66 = arith.shrui %64, %65 : vector<8x128xi32>
      %67 = arith.xori %64, %66 : vector<8x128xi32>
      %c4_i32 = arith.constant 4 : i32
      %68 = arith.muli %arg4, %c4_i32 : i32
      %c65535_i32 = arith.constant 65535 : i32
      %69 = vector.broadcast %c65535_i32 : i32 to vector<8x128xi32>
      %70 = arith.andi %50, %69 : vector<8x128xi32>
      %71 = vector.broadcast %1 : i32 to vector<8x128xi32>
      %72 = arith.cmpi ult, %70, %71 : vector<8x128xi32>
      %73 = vector.broadcast %68 : i32 to vector<8x128xi32>
      %74 = arith.cmpi slt, %73, %3 : vector<8x128xi32>
      %75 = arith.andi %72, %74 : vector<8x128xi1>
      %76 = arith.extui %75 : vector<8x128xi1> to vector<8x128xi32>
      %c16_i32_17 = arith.constant 16 : i32
      %77 = vector.broadcast %c16_i32_17 : i32 to vector<8x128xi32>
      %78 = arith.shrui %50, %77 : vector<8x128xi32>
      %79 = vector.broadcast %1 : i32 to vector<8x128xi32>
      %80 = arith.cmpi ult, %78, %79 : vector<8x128xi32>
      %c1_i32_18 = arith.constant 1 : i32
      %81 = arith.addi %68, %c1_i32_18 : i32
      %82 = vector.broadcast %81 : i32 to vector<8x128xi32>
      %83 = arith.cmpi slt, %82, %3 : vector<8x128xi32>
      %84 = arith.andi %80, %83 : vector<8x128xi1>
      %85 = arith.extui %84 : vector<8x128xi1> to vector<8x128xi32>
      %c65535_i32_19 = arith.constant 65535 : i32
      %86 = vector.broadcast %c65535_i32_19 : i32 to vector<8x128xi32>
      %87 = arith.andi %67, %86 : vector<8x128xi32>
      %88 = vector.broadcast %1 : i32 to vector<8x128xi32>
      %89 = arith.cmpi ult, %87, %88 : vector<8x128xi32>
      %c2_i32_20 = arith.constant 2 : i32
      %90 = arith.addi %68, %c2_i32_20 : i32
      %91 = vector.broadcast %90 : i32 to vector<8x128xi32>
      %92 = arith.cmpi slt, %91, %3 : vector<8x128xi32>
      %93 = arith.andi %89, %92 : vector<8x128xi1>
      %94 = arith.extui %93 : vector<8x128xi1> to vector<8x128xi32>
      %c16_i32_21 = arith.constant 16 : i32
      %95 = vector.broadcast %c16_i32_21 : i32 to vector<8x128xi32>
      %96 = arith.shrui %67, %95 : vector<8x128xi32>
      %97 = vector.broadcast %1 : i32 to vector<8x128xi32>
      %98 = arith.cmpi ult, %96, %97 : vector<8x128xi32>
      %c3_i32 = arith.constant 3 : i32
      %99 = arith.addi %68, %c3_i32 : i32
      %100 = vector.broadcast %99 : i32 to vector<8x128xi32>
      %101 = arith.cmpi slt, %100, %3 : vector<8x128xi32>
      %102 = arith.andi %98, %101 : vector<8x128xi1>
      %103 = arith.extui %102 : vector<8x128xi1> to vector<8x128xi32>
      %104 = arith.addi %arg5, %76 : vector<8x128xi32>
      %105 = arith.addi %104, %85 : vector<8x128xi32>
      %106 = arith.addi %105, %94 : vector<8x128xi32>
      %107 = arith.addi %106, %103 : vector<8x128xi32>
      scf.yield %107 : vector<8x128xi32>
    }
    %32 = arith.sitofp %31 : vector<8x128xi32> to vector<8x128xf32>
    %c0_4 = arith.constant 0 : index
    %c0_5 = arith.constant 0 : index
    %33 = vector.load %arg3[%c0_4, %c0_5] : memref<8x128xf32, #tpu.memory_space<vmem>>, vector<8x128xf32>
    tpu.vector_store %arg3[%c0_4, %c0_5], %32 {strides = array<i32>} : memref<8x128xf32, #tpu.memory_space<vmem>>, vector<8x128xf32>,
    return
  }
  func.func @transform_0(%arg0: i32, %arg1: memref<3xi32, #tpu.memory_space<smem>>) -> (i32, i32) {
    %c0_i32 = arith.constant 0 : i32
    %c0_i32_0 = arith.constant 0 : i32
    return %arg0, %c0_i32 : i32, i32
  }
  func.func @transform_1(%arg0: i32, %arg1: memref<3xi32, #tpu.memory_space<smem>>) -> (i32, i32) {
    %c0_i32 = arith.constant 0 : i32
    %c0_i32_0 = arith.constant 0 : i32
    return %arg0, %c0_i32 : i32, i32
  }
}

</mosaic_0001>

<llo_original>
// kernel: _binomial_dropout_impl.3
$region0: #{_binomial_dropout_impl.3}
  #allocation0 [shape = 'u32[]', space=smem, size = 0x4, offset = 0x4, fixed_abs, tag = 'smem constant byte address 0x4 - core index']
  #allocation1 [shape = 'u32[144,128]{1,0:T(1,128)}', space=vmem, size = 0x12000, scoped, tag = 'internal scratch']
  #allocation2 [shape = 's32[1]{0}', space=sflag, size = 0x4, scoped, tag = 'scoped memory for _binomial_dropout_impl.3']
  #allocation3 [shape = 'u8[512]{0}', space=smem, size = 0x200, scoped, tag = 'prefetched SMEM operand 0']
  %s0 = inlined_call_operand.vmem [shape: s32[3], index: 0, kind: input, shape index: {}]
  %s1 = inlined_call_operand.vmem [shape: s32[8,128], index: 1, kind: input, shape index: {}]
  %s2 = inlined_call_operand.vmem [shape: f32[8,128], index: 2, kind: output, shape index: {}]
  %s3 = sld [smem:[#allocation0]]
  $region21: #{_binomial_dropout_impl.3} parent=0
    _
  %s5 = ssub.s32 1, %s3
  %s6 = scalar_select 0, %s5, %s3
  %s7 = sshll.u32 %s0, 4
  %s8 = int_to_ptr.vmem [resolvable:$true] %s7
  %10 = dma.vmem_to_smem %s8, 16, [#allocation3], [#allocation2]
  %11 = dma.done [#allocation2], 16
  %12 = sfence
  // Predicated region
  $region2: #{_binomial_dropout_impl.3} parent=0 // pred_check
    _
  $region3: #{_binomial_dropout_impl.3} parent=0 // pred_check_branch
    %14 = sbr.rel (0) target = $region5
  $region4: #{_binomial_dropout_impl.3} parent=0 // pred_region
    _
  $region5: #{_binomial_dropout_impl.3} parent=0 // pred_fallthru
    _
  %s15 = sld [smem:[#allocation3]]
  %s16 = sld [smem:[#allocation3 + $0x1]]
  %s17 = sld [smem:[#allocation3 + $0x2]]
  %v18 = vld [vmem:[%s1] sm:$0xff]
  %v19 = vlaneseq
  %v20 = vshrl.u32 %v19, 7
  %v21 = vlaneseq
  %v22 = vand.u32 %v21, 127
  %s23 = smul.u32 0, 8
  %v24 = vstv %s23
  %v25 = vadd.s32 %v24, %v20
  %v26 = vmul.u32 %v25, 128
  %v27 = vadd.s32 %v26, %v22
  %s28 = smul.u32 %s15, 2654435769
  %v29 = vstv %s28
  %v30 = vadd.s32 %v27, %v29
  %v31 = vshrl.u32 %v30, 16
  %v32 = vxor.u32 %v30, %v31
  %v33 = vmul.u32 %v32, 2146121005
  %v34 = vshrl.u32 %v33, 15
  %v35 = vxor.u32 %v33, %v34
  %v36 = vmul.u32 %v35, 2221713035
  %v37 = vshrl.u32 %v36, 16
  %v38 = vxor.u32 %v36, %v37
  // While loop
  $region6: #{_binomial_dropout_impl.3} parent=0 // loop_pre_header
    _
  $region7: #{_binomial_dropout_impl.3} parent=0 // loop_header
    %s40 = sphi 0, %s42
    %p41 = scmp.ge.s32.totalorder %s40, %s17
    %v45 = vphi 0, %v98
  $region8: #{_binomial_dropout_impl.3} parent=0 // loop_header_branch
    %44 = sbr.rel (%p41) target = $region12
  $region9: #{_binomial_dropout_impl.3} parent=0 // loop_body
    %s46 = smul.u32 %s40, 198677718
    %v47 = vstv %s46
    %v48 = vadd.s32 %v38, %v47
    %v49 = vshrl.u32 %v48, 16
    %v50 = vxor.u32 %v48, %v49
    %v51 = vmul.u32 %v50, 2146121005
    %v52 = vshrl.u32 %v51, 15
    %v53 = vxor.u32 %v51, %v52
    %v54 = vmul.u32 %v53, 2221713035
    %v55 = vshrl.u32 %v54, 16
    %v56 = vxor.u32 %v54, %v55
    %v57 = vadd.s32 %v48, 2246822507
    %v58 = vshrl.u32 %v57, 16
    %v59 = vxor.u32 %v57, %v58
    %v60 = vmul.u32 %v59, 2146121005
    %v61 = vshrl.u32 %v60, 15
    %v62 = vxor.u32 %v60, %v61
    %v63 = vmul.u32 %v62, 2221713035
    %v64 = vshrl.u32 %v63, 16
    %v65 = vxor.u32 %v63, %v64
    %s66 = smul.u32 %s40, 4
    %v67 = vand.u32 %v56, 65535
    %v68 = vstv %s16
    %vm69 = vcmp.lt.u32.totalorder %v67, %v68
    %v70 = vstv %s66
    %vm71 = vcmp.lt.s32.totalorder %v70, %v18
    %vm72 = vmand %vm69, %vm71
    %v73 = vsel %vm72, 1, 0
    %v74 = vshrl.u32 %v56, 16
    %vm75 = vcmp.lt.u32.totalorder %v74, %v68
    %s76 = sadd.s32 %s66, 1
    %v77 = vstv %s76
    %vm78 = vcmp.lt.s32.totalorder %v77, %v18
    %vm79 = vmand %vm75, %vm78
    %v80 = vsel %vm79, 1, 0
    %v81 = vand.u32 %v65, 65535
    %vm82 = vcmp.lt.u32.totalorder %v81, %v68
    %s83 = sadd.s32 %s66, 2
    %v84 = vstv %s83
    %vm85 = vcmp.lt.s32.totalorder %v84, %v18
    %vm86 = vmand %vm82, %vm85
    %v87 = vsel %vm86, 1, 0
    %v88 = vshrl.u32 %v65, 16
    %vm89 = vcmp.lt.u32.totalorder %v88, %v68
    %s90 = sadd.s32 %s66, 3
    %v91 = vstv %s90
    %vm92 = vcmp.lt.s32.totalorder %v91, %v18
    %vm93 = vmand %vm89, %vm92
    %v94 = vsel %vm93, 1, 0
    %v95 = vadd.s32 %v45, %v73
    %v96 = vadd.s32 %v95, %v80
    %v97 = vadd.s32 %v96, %v87
    %v98 = vadd.s32 %v97, %v94
  $region10: #{_binomial_dropout_impl.3} parent=0 // loop_footer
    %s42 = sadd.s32 %s40, 1
  $region11: #{_binomial_dropout_impl.3} parent=0 // loop_footer_branch
    %39 = sbr.rel target = $region7
  $region12: #{_binomial_dropout_impl.3} parent=0 // loop_exit
    _
  %v99 = vcvt.s32.f32 %v45
  %100 = vst [vmem:[%s2] sm:$0xff] %v99
  // Predicated region
  $region13: #{_binomial_dropout_impl.3} parent=0 // pred_check
    _
  $region14: #{_binomial_dropout_impl.3} parent=0 // pred_check_branch
    %102 = sbr.rel (0) target = $region16
  $region15: #{_binomial_dropout_impl.3} parent=0 // pred_region
    _
  $region16: #{_binomial_dropout_impl.3} parent=0 // pred_fallthru
    _
  // Predicated region
  $region17: #{_binomial_dropout_impl.3} parent=0 // pred_check
    _
  $region18: #{_binomial_dropout_impl.3} parent=0 // pred_check_branch
    %104 = sbr.rel (0) target = $region20
  $region19: #{_binomial_dropout_impl.3} parent=0 // pred_region
    _
  $region20: #{_binomial_dropout_impl.3} parent=0 // pred_fallthru
    _

</llo_original>
